<compile_context>
chip_gen: v6e
topology: v6e:2x2x1
jax: 0.10.0
libtpu: 0.0.40
codegen_flags: <defaults>
</compile_context>

<pallas_src>
import jax
import jax.numpy as jnp
from jax.experimental import pallas as pl
from jax.experimental.pallas import tpu as pltpu


def _forward_loss_kernel(out_ref, mt_ref, z_ref, term_ref):
    """Per-tile body.

    out_ref : (TN, C)   logits tile, native dtype (f32 or bf16), streamed
    mt_ref  : (C, K+1)  [M^T | ones] in M's native dtype, resident across grid
    z_ref   : (TN, 1)   int32 labels tile
    term_ref: (TN, 1)   f32 per-sample log-terms
    """
    x = out_ref[...]                                     # (TN, C) native dtype
    mt = mt_ref[...]                                     # (C, K+1) native dtype
    z = z_ref[...]                                       # (TN, 1) int32

    tn = x.shape[0]
    kp1 = mt.shape[1]

    # Numerically stable *unnormalized* softmax numerator; normalization is
    # deferred.  Subtract in the input dtype (bf16 VPU on v6e/v7x), exp in f32.
    mx = jnp.max(x, axis=1, keepdims=True)               # (TN, 1)
    e = jnp.exp((x - mx).astype(jnp.float32))            # (TN, C) f32 (EUP)

    # One fused MXU call, contraction over C:
    #   S[i, k] = sum_c e[i,c] * M[k,c]  (k < K)  == den_i * Mp[k, i]
    #   S[i, K] = sum_c e[i,c]                     == den_i
    # The dot runs in M's dtype (bf16 MXU rate if M is bf16); f32 accumulation.
    s = jnp.dot(e.astype(mt.dtype), mt,
                preferred_element_type=jnp.float32)      # (TN, K+1) f32

    den = s[:, kp1 - 1:kp1]                              # (TN, 1)
    kidx = jax.lax.broadcasted_iota(jnp.int32, (tn, kp1), 1)
    # z in [0, K) never selects the ones-column (index K).
    picked = jnp.sum(jnp.where(kidx == z, s, 0.0),
                     axis=1, keepdims=True)              # (TN, 1) = den*Mp[z_i,i]

    # log(Mp[z_i,i] + eps) == log(picked/den + eps) == log(picked + eps*den) - log(den)
    eps = jnp.float32(1e-10)
    term_ref[...] = jnp.log(picked + eps * den) - jnp.log(den)


def _vmem_capacity_bytes():
    """Physical VMEM of the local chip; conservative v7x-sized fallback."""
    try:
        cap = getattr(pltpu.get_tpu_info(), "vmem_capacity_bytes", None)
        if cap:
            return int(cap)
    except Exception:
        pass
    return 64 * 1024 * 1024


def forward_loss_gpt4o(out, M, z, *, tn=None):
    """out: (N, C) float logits, M: (K, C) float, z: (N,) integer labels in [0, K)."""
    N, C = out.shape
    K, C2 = M.shape
    assert C2 == C, (M.shape, out.shape)
    kp1 = K + 1

    # [M^T | 1] built once outside the kernel (tiny, K*C); keeps the in-kernel
    # MXU contraction over C and folds the softmax denominator into the matmul.
    mt_aug = jnp.concatenate(
        [jnp.transpose(M), jnp.ones((C, 1), dtype=M.dtype)], axis=1)

    in_bytes = jnp.dtype(out.dtype).itemsize
    m_bytes = jnp.dtype(mt_aug.dtype).itemsize

    vmem_cap = _vmem_capacity_bytes()
    vmem_budget = int(vmem_cap * 0.7)      # ~45 MiB on v7x, ~90 MiB on v5e/v6e

    # VMEM-aware row-tile sizing:
    #   per-row : double-buffered logits block + f32 in-kernel temporaries
    #   fixed   : two pipeline buffers of [M^T | 1] + slack
    per_row = 2 * C * in_bytes + 3 * C * 4 + 4 * kp1 + 64
    fixed = 2 * C * kp1 * m_bytes + (1 << 20)

    if tn is None:
        tn = (vmem_budget - fixed) // per_row
        tn = max(128, min(int(tn), 2048))
    if tn >= N:
        tn = N                                   # full-array block
    else:
        tn = max(128, (tn // 128) * 128)         # lane/sublane aligned (f32 & bf16)
        if tn >= N:
            tn = N

    num_tiles = pl.cdiv(N, tn)
    z2 = z.astype(jnp.int32).reshape(N, 1)

    vmem_limit = int(min(max(vmem_budget, fixed + tn * per_row),
                         int(vmem_cap * 0.9)))

    cost = pl.CostEstimate(
        flops=2 * N * C * kp1 + 6 * N * C,
        transcendentals=N * C + 2 * N,
        bytes_accessed=N * C * in_bytes + C * kp1 * m_bytes + N * 4 + N * 4,
    )

    terms = pl.pallas_call(
        _forward_loss_kernel,
        out_shape=jax.ShapeDtypeStruct((N, 1), jnp.float32),
        grid=(num_tiles,),
        in_specs=[
            pl.BlockSpec((tn, C), lambda i: (i, 0)),     # streamed logits tile
            pl.BlockSpec((C, kp1), lambda i: (0, 0)),    # [M^T|1] resident across grid
            pl.BlockSpec((tn, 1), lambda i: (i, 0)),     # labels tile (int32)
        ],
        out_specs=pl.BlockSpec((tn, 1), lambda i: (i, 0)),
        compiler_params=pltpu.CompilerParams(
            dimension_semantics=("parallel",),           # N-tiles are independent
            vmem_limit_bytes=vmem_limit,
        ),
        cost_estimate=cost,
    )(out, mt_aug, z2)

    # Tiny glue; the HBM output is exactly (N, 1), so padded rows of the last
    # (partial) tile are never written back and the mean divides by the true N.
    return -jnp.mean(terms)


if __name__ == "__main__":
    key = jax.random.PRNGKey(0)
    k1, k2, k3 = jax.random.split(key, 3)

    N, C, K = 300, 256, 16       # N deliberately NOT a multiple of the tile size
    out = jax.random.normal(k1, (N, C), dtype=jnp.float32)
    z = jax.random.randint(k2, (N,), 0, K, dtype=jnp.int32)
    M_raw = jax.random.uniform(k3, (K, C), dtype=jnp.float32) + 0.1
    M = M_raw / jnp.sum(M_raw, axis=1, keepdims=True)    # row-stochastic-ish

    # plain-JAX reference mirroring the torch forward
    p_ref = jax.nn.softmax(out, axis=1)
    Mp = M @ p_ref.T
    ref = -jnp.mean(jnp.log(Mp[z, jnp.arange(N)] + 1e-10))

    # f32 path, forced small tile -> grid of 3 with a partial last tile
    loss = forward_loss_gpt4o(out, M, z, tn=128)
    jax.block_until_ready(loss)
    assert jnp.allclose(loss, ref, rtol=1e-5, atol=1e-5), (loss, ref)

    # bf16 fast path: half the HBM bytes on the dominant logits stream and the
    # bf16 MXU rate for the fused matmul; looser tolerance for bf16 rounding.
    loss_bf16 = forward_loss_gpt4o(out.astype(jnp.bfloat16),
                                   M.astype(jnp.bfloat16), z)
    jax.block_until_ready(loss_bf16)
    assert jnp.allclose(loss_bf16, ref, rtol=5e-2, atol=5e-2), (loss_bf16, ref)

    print("KERNEL_OK")
</pallas_src>

<mosaic_0001>
module attributes {stable_mosaic.version = 11 : i64} {
  func.func @_forward_loss_kernel(%arg0: i32, %arg1: memref<128x256xf32, #tpu.memory_space<vmem>>, %arg2: memref<256x17xf32, #tpu.memory_space<vmem>>, %arg3: memref<128x1xi32, #tpu.memory_space<vmem>>, %arg4: memref<128x1xf32, #tpu.memory_space<vmem>>) attributes {dimension_semantics = [#tpu.dimension_semantics<parallel>], iteration_bounds = array<i64: 3>, scalar_prefetch = 0 : i64, scratch_operands = 0 : i64, tpu.core_type = #tpu.core_type<tc>, window_params = [{transform_indices = @transform_0, window_bounds = array<i64: 128, 256>}, {pipeline_mode = #tpu.pipeline_mode<synchronous>, transform_indices = @transform_1, window_bounds = array<i64: 256, 17>}, {transform_indices = @transform_2, window_bounds = array<i64: 128, 1>}, {transform_indices = @transform_3, window_bounds = array<i64: 128, 1>}]} {
    %c0 = arith.constant 0 : index
    %c0_0 = arith.constant 0 : index
    %0 = vector.load %arg1[%c0, %c0_0] : memref<128x256xf32, #tpu.memory_space<vmem>>, vector<128x256xf32>
    %c0_1 = arith.constant 0 : index
    %c0_2 = arith.constant 0 : index
    %1 = vector.load %arg2[%c0_1, %c0_2] : memref<256x17xf32, #tpu.memory_space<vmem>>, vector<256x17xf32>
    %c0_3 = arith.constant 0 : index
    %c0_4 = arith.constant 0 : index
    %2 = vector.load %arg3[%c0_3, %c0_4] : memref<128x1xi32, #tpu.memory_space<vmem>>, vector<128x1xi32>
    %cst = arith.constant dense<0xFF800000> : vector<128xf32>
    %3 = vector.multi_reduction <maximumf>, %0, %cst [1] : vector<128x256xf32> to vector<128xf32>
    %4 = vector.shape_cast %3 : vector<128xf32> to vector<128x1xf32>
    %5 = vector.broadcast %4 : vector<128x1xf32> to vector<128x256xf32>
    %6 = arith.subf %0, %5 : vector<128x256xf32>
    %7 = math.exp %6 : vector<128x256xf32>
    %cst_5 = arith.constant dense<0.000000e+00> : vector<128x17xf32>
    %8 = tpu.matmul %7, %1, %cst_5 {dimension_numbers = #tpu.dot_dimension_numbers<[1], [0], [0], [1], [0, 0, 1, 1], [], []>} : vector<128x256xf32>, vector<256x17xf32>, vector<128x17xf32> -> vector<128x17xf32>
    %9 = vector.extract_strided_slice %8 {offsets = [0, 16], sizes = [128, 1], strides = [1, 1]} : vector<128x17xf32> to vector<128x1xf32>
    %10 = tpu.iota {dimensions = array<i32: 1>} : vector<128x17xi32>
    %11 = vector.broadcast %2 : vector<128x1xi32> to vector<128x17xi32>
    %12 = arith.cmpi eq, %10, %11 : vector<128x17xi32>
    %cst_6 = arith.constant 0.000000e+00 : f32
    %13 = vector.broadcast %cst_6 : f32 to vector<128x17xf32>
    %14 = arith.select %12, %8, %13 : vector<128x17xi1>, vector<128x17xf32>
    %cst_7 = arith.constant dense<0.000000e+00> : vector<128xf32>
    %15 = vector.multi_reduction <add>, %14, %cst_7 [1] : vector<128x17xf32> to vector<128xf32>
    %16 = vector.shape_cast %15 : vector<128xf32> to vector<128x1xf32>
    %cst_8 = arith.constant 1.000000e-10 : f32
    %17 = vector.broadcast %cst_8 : f32 to vector<128x1xf32>
    %18 = arith.mulf %17, %9 : vector<128x1xf32>
    %19 = arith.addf %16, %18 : vector<128x1xf32>
    %20 = math.log %19 : vector<128x1xf32>
    %21 = math.log %9 : vector<128x1xf32>
    %22 = arith.subf %20, %21 : vector<128x1xf32>
    %c0_9 = arith.constant 0 : index
    %c0_10 = arith.constant 0 : index
    %23 = vector.load %arg4[%c0_9, %c0_10] : memref<128x1xf32, #tpu.memory_space<vmem>>, vector<128x1xf32>
    tpu.vector_store %arg4[%c0_9, %c0_10], %22 {strides = array<i32>} : memref<128x1xf32, #tpu.memory_space<vmem>>, vector<128x1xf32>,
    return
  }
  func.func @transform_0(%arg0: i32) -> (i32, i32) {
    %c0_i32 = arith.constant 0 : i32
    %c0_i32_0 = arith.constant 0 : i32
    return %arg0, %c0_i32 : i32, i32
  }
  func.func @transform_1(%arg0: i32) -> (i32, i32) {
    %c0_i32 = arith.constant 0 : i32
    %c0_i32_0 = arith.constant 0 : i32
    %c0_i32_1 = arith.constant 0 : i32
    return %c0_i32, %c0_i32_0 : i32, i32
  }
  func.func @transform_2(%arg0: i32) -> (i32, i32) {
    %c0_i32 = arith.constant 0 : i32
    %c0_i32_0 = arith.constant 0 : i32
    return %arg0, %c0_i32 : i32, i32
  }
  func.func @transform_3(%arg0: i32) -> (i32, i32) {
    %c0_i32 = arith.constant 0 : i32
    %c0_i32_0 = arith.constant 0 : i32
    return %arg0, %c0_i32 : i32, i32
  }
}

</mosaic_0001>

<llo_original>
// kernel: tpu_custom_call.1
$region0: #{tpu_custom_call.1}
  #allocation0 [shape = 'u32[]', space=smem, size = 0x4, offset = 0x4, fixed_abs, tag = 'smem constant byte address 0x4 - core index']
  #allocation1 [shape = 'u32[144,128]{1,0:T(1,128)}', space=vmem, size = 0x12000, scoped, tag = 'internal scratch']
  %s0 = inlined_call_operand.vmem [shape: f32[300,256], index: 0, kind: input, shape index: {}]
  %s1 = inlined_call_operand.vmem [shape: f32[256,17], index: 1, kind: input, shape index: {}]
  %s2 = inlined_call_operand.vmem [shape: s32[300,1], index: 2, kind: input, shape index: {}]
  %s3 = inlined_call_operand.vmem [shape: f32[300,1], index: 3, kind: output, shape index: {}]
  %s4 = sld [smem:[#allocation0]]
  $region93: #{tpu_custom_call.1} parent=0
    _
  %s6 = ssub.s32 1, %s4
  %s7 = scalar_select 0, %s6, %s4
  $region1: #{tpu_custom_call.1} parent=0
    #allocation2 [shape = 'u8[131072]{0}', space=vmem, size = 0x20000, scoped, tag = 'output window, operand 0']
    loop: start=0, step=1, limit=5
    $region2: #{tpu_custom_call.1} parent=1 // loop_pre_header
      _
    $region3: #{tpu_custom_call.1} parent=1 // loop_header
      %s9 = sphi 0, %s13
      %p10 = scmp.ge.s32.totalorder %s9, 5
      %s19 = sphi 0, %s21
      %s22 = sphi 0, %s19
      %s23 = sphi 0, %s22
      %s39 = sphi 0, %s23
      %s43 = sphi 0, %s43
      %s45 = sphi 0, %s43
      %s46 = sphi 0, %s45
      %s60 = sphi 0, %s46
      %s66 = sphi 0, %s68
      %s69 = sphi 0, %s66
      %s70 = sphi 0, %s69
      %s86 = sphi 0, %s70
      %s92 = sphi 0, %s94
      %s95 = sphi 0, %s92
      %s96 = sphi 0, %s95
      %s112 = sphi 0, %s96
    $region4: #{tpu_custom_call.1} parent=1 // loop_header_branch
      %12 = sbr.rel (%p10) target = $region8
    $region5: #{tpu_custom_call.1} parent=1 // loop_body
      %s14 = ssub.s32 %s9, 1
      %s15 = ssub.s32 %s9, 2
      %s16 = sadd.s32 %s9, 1
      %s17 = ssub.s32 %s9, %s16
      %p18 = scmp.eq.s32.totalorder %s17, 0
      %s20 = sadd.s32 %s19, 1
      %s21 = scalar_select %p18, %s19, %s20
      %p24 = pneg %p18
      %p25 = scmp.eq.s32.totalorder %s9, 2
      %p26 = por %p24, %p25
      %p27 = scmp.ne.s32.totalorder %s19, %s22
      %p28 = scmp.eq.s32.totalorder %s9, 0
      %p29 = por %p27, %p28
      %p30 = scmp.ne.s32.totalorder %s19, %s22
      %p31 = scmp.eq.s32.totalorder %s14, 2
      %p32 = por %p30, %p31
      %p33 = scmp.ne.s32.totalorder %s22, %s23
      %p34 = scmp.eq.s32.totalorder %s14, 0
      %p35 = por %p33, %p34
      %p36 = scmp.ne.s32.totalorder %s22, %s23
      %p37 = scmp.eq.s32.totalorder %s15, 2
      %p38 = por %p36, %p37
      %p40 = scmp.ne.s32.totalorder %s23, %s39
      %p41 = scmp.eq.s32.totalorder %s15, 0
      %p42 = por %p40, %p41
      %s44 = sadd.s32 %s43, 1
      %p47 = scmp.eq.s32.totalorder %s9, 2
      %p48 = scmp.ne.s32.totalorder %s43, %s45
      %p49 = scmp.eq.s32.totalorder %s9, 0
      %p50 = por %p48, %p49
      %p51 = scmp.ne.s32.totalorder %s43, %s45
      %p52 = scmp.eq.s32.totalorder %s14, 2
      %p53 = por %p51, %p52
      %p54 = scmp.ne.s32.totalorder %s45, %s46
      %p55 = scmp.eq.s32.totalorder %s14, 0
      %p56 = por %p54, %p55
      %p57 = scmp.ne.s32.totalorder %s45, %s46
      %p58 = scmp.eq.s32.totalorder %s15, 2
      %p59 = por %p57, %p58
      %p61 = scmp.ne.s32.totalorder %s46, %s60
      %p62 = scmp.eq.s32.totalorder %s15, 0
      %p63 = por %p61, %p62
      %s64 = ssub.s32 %s9, %s16
      %p65 = scmp.eq.s32.totalorder %s64, 0
      %s67 = sadd.s32 %s66, 1
      %s68 = scalar_select %p65, %s66, %s67
      %p71 = pneg %p65
      %p72 = scmp.eq.s32.totalorder %s9, 2
      %p73 = por %p71, %p72
      %p74 = scmp.ne.s32.totalorder %s66, %s69
      %p75 = scmp.eq.s32.totalorder %s9, 0
      %p76 = por %p74, %p75
      %p77 = scmp.ne.s32.totalorder %s66, %s69
      %p78 = scmp.eq.s32.totalorder %s14, 2
      %p79 = por %p77, %p78
      %p80 = scmp.ne.s32.totalorder %s69, %s70
      %p81 = scmp.eq.s32.totalorder %s14, 0
      %p82 = por %p80, %p81
      %p83 = scmp.ne.s32.totalorder %s69, %s70
      %p84 = scmp.eq.s32.totalorder %s15, 2
      %p85 = por %p83, %p84
      %p87 = scmp.ne.s32.totalorder %s70, %s86
      %p88 = scmp.eq.s32.totalorder %s15, 0
      %p89 = por %p87, %p88
      %s90 = ssub.s32 %s9, %s16
      %p91 = scmp.eq.s32.totalorder %s90, 0
      %s93 = sadd.s32 %s92, 1
      %s94 = scalar_select %p91, %s92, %s93
      %p97 = pneg %p91
      %p98 = scmp.eq.s32.totalorder %s9, 2
      %p99 = por %p97, %p98
      %p100 = scmp.ne.s32.totalorder %s92, %s95
      %p101 = scmp.eq.s32.totalorder %s9, 0
      %p102 = por %p100, %p101
      %p103 = scmp.ne.s32.totalorder %s92, %s95
      %p104 = scmp.eq.s32.totalorder %s14, 2
      %p105 = por %p103, %p104
      %p106 = scmp.ne.s32.totalorder %s95, %s96
      %p107 = scmp.eq.s32.totalorder %s14, 0
      %p108 = por %p106, %p107
      %p109 = scmp.ne.s32.totalorder %s95, %s96
      %p110 = scmp.eq.s32.totalorder %s15, 2
      %p111 = por %p109, %p110
      %p113 = scmp.ne.s32.totalorder %s96, %s112
      %p114 = scmp.eq.s32.totalorder %s15, 0
      %p115 = por %p113, %p114
      %p116 = scmp.le.s32.totalorder 1, %s9
      %p117 = scmp.lt.s32.totalorder %s9, 4
      %p118 = pnand %p116, %p117
      %p119 = pneg %p118
      // Predicated region
      $region9: #{tpu_custom_call.1} parent=5 // pred_check
        _
      $region10: #{tpu_custom_call.1} parent=5 // pred_check_branch
        %121 = sbr.rel (%p118) target = $region12
      $region11: #{tpu_custom_call.1} parent=5 // pred_region
        %s122 = ssub.s32 %s9, 1
        // Predicated region
        $region13: #{tpu_custom_call.1} parent=11 // pred_check
          %p123 = pneg %p56
        $region14: #{tpu_custom_call.1} parent=11 // pred_check_branch
          %125 = sbr.rel (%p123) target = $region16
        $region15: #{tpu_custom_call.1} parent=11 // pred_region
          _
        $region16: #{tpu_custom_call.1} parent=11 // pred_fallthru
          _
      $region12: #{tpu_custom_call.1} parent=5 // pred_fallthru
        _
      %p126 = scmp.lt.s32.totalorder %s9, 3
      // Predicated region
      $region17: #{tpu_custom_call.1} parent=5 // pred_check
        %p127 = pneg %p126
      $region18: #{tpu_custom_call.1} parent=5 // pred_check_branch
        %129 = sbr.rel (%p127) target = $region20
      $region19: #{tpu_custom_call.1} parent=5 // pred_region
        // Predicated region
        $region21: #{tpu_custom_call.1} parent=19 // pred_check
          %p130 = pneg %p29
        $region22: #{tpu_custom_call.1} parent=19 // pred_check_branch
          %132 = sbr.rel (%p130) target = $region24
        $region23: #{tpu_custom_call.1} parent=19 // pred_region
          %s133 = smul.u32 16, %s9
          %s134 = ssub.s32 38, %s133
          %p135 = scmp.lt.s32.totalorder %s134, 16
          %s136 = scalar_select %p135, %s134, 16
          %s137 = smul.u32 128, %s136
          %s138 = smul.u32 %s137, 2
          %p139 = scmp.lt.s32.totalorder %s133, 37
          %s140 = scalar_select %p139, %s133, 37
          %s141 = smul.addr %s140, 2
          %s142 = smul.addr %s141, 8
          %s143 = scalar_lea.vmem %s0, %s142
          %s144 = smul.u32 16, %s9
          %s145 = ssub.s32 38, %s144
          %p146 = scmp.lt.s32.totalorder %s145, 16
          %s147 = scalar_select %p146, %s145, 16
          %s148 = smul.u32 128, %s147
          %s149 = smul.u32 %s148, 2
        $region24: #{tpu_custom_call.1} parent=19 // pred_fallthru
          _
        // Predicated region
        $region25: #{tpu_custom_call.1} parent=19 // pred_check
          %p150 = pneg %p76
        $region26: #{tpu_custom_call.1} parent=19 // pred_check_branch
          %152 = sbr.rel (%p150) target = $region28
        $region27: #{tpu_custom_call.1} parent=19 // pred_region
          %s153 = smul.u32 16, %s9
          %s154 = ssub.s32 38, %s153
          %p155 = scmp.lt.s32.totalorder %s154, 16
          %s156 = scalar_select %p155, %s154, 16
          %s157 = smul.u32 128, %s156
          %p158 = scmp.lt.s32.totalorder %s153, 37
          %s159 = scalar_select %p158, %s153, 37
          %s160 = smul.addr %s159, 8
          %s161 = scalar_lea.vmem %s2, %s160
          %s162 = smul.u32 16, %s9
          %s163 = ssub.s32 38, %s162
          %p164 = scmp.lt.s32.totalorder %s163, 16
          %s165 = scalar_select %p164, %s163, 16
          %s166 = smul.u32 128, %s165
        $region28: #{tpu_custom_call.1} parent=19 // pred_fallthru
          _
      $region20: #{tpu_custom_call.1} parent=5 // pred_fallthru
        _
      %p167 = scmp.le.s32.totalorder 1, %s9
      %p168 = scmp.lt.s32.totalorder %s9, 4
      %p169 = pnand %p167, %p168
      %p170 = pneg %p169
      // Predicated region
      $region29: #{tpu_custom_call.1} parent=5 // pred_check
        _
      $region30: #{tpu_custom_call.1} parent=5 // pred_check_branch
        %172 = sbr.rel (%p169) target = $region32
      $region31: #{tpu_custom_call.1} parent=5 // pred_region
        %s173 = ssub.s32 %s9, 1
        %s174 = smul.u32 16, %s14
        %s175 = ssub.s32 38, %s174
        %p176 = scmp.lt.s32.totalorder %s175, 16
        %s177 = scalar_select %p176, %s175, 16
        %s178 = smul.u32 128, %s177
        %s179 = smul.u32 %s178, 2
        %p180 = scmp.lt.s32.totalorder %s174, 37
        %s181 = scalar_select %p180, %s174, 37
        %s182 = smul.addr %s181, 2
        %s183 = smul.addr %s182, 8
        %s184 = scalar_lea.vmem %s0, %s183
        %p185 = pneg %p35
        %p186 = pneg %p32
        %p187 = pneg %p56
        %p188 = pneg %p53
        %s189 = smul.u32 16, %s14
        %s190 = ssub.s32 38, %s189
        %p191 = scmp.lt.s32.totalorder %s190, 16
        %s192 = scalar_select %p191, %s190, 16
        %s193 = smul.u32 128, %s192
        %p194 = scmp.lt.s32.totalorder %s189, 37
        %s195 = scalar_select %p194, %s189, 37
        %s196 = smul.addr %s195, 8
        %s197 = scalar_lea.vmem %s2, %s196
        %p198 = pneg %p82
        %p199 = pneg %p79
        %p200 = pneg %p108
        %p201 = pneg %p105
        %s202 = sand.u32 %s95, 1
        %s203 = sand.u32 %s95, 1
        %s204 = smul.addr %s203, 128
        %s205 = scalar_lea.vmem [#allocation2], %s204
        %s206 = smul.u32 16, %s14
        %s207 = ssub.s32 38, %s206
        %p208 = scmp.lt.s32.totalorder %s207, 16
        %s209 = scalar_select %p208, %s207, 16
        %s210 = smul.u32 128, %s209
        %s211 = smul.u32 %s210, 2
        %p212 = scmp.lt.s32.totalorder %s206, 37
        %s213 = scalar_select %p212, %s206, 37
        %s214 = smul.addr %s213, 2
        %s215 = smul.addr %s214, 8
        %s216 = scalar_lea.vmem %s0, %s215
        %s217 = smul.u32 16, %s14
        %s218 = ssub.s32 38, %s217
        %p219 = scmp.lt.s32.totalorder %s218, 16
        %s220 = scalar_select %p219, %s218, 16
        %s221 = smul.u32 128, %s220
        %s222 = smul.u32 %s221, 2
        %s223 = smul.u32 16, %s14
        %s224 = ssub.s32 38, %s223
        %p225 = scmp.lt.s32.totalorder %s224, 16
        %s226 = scalar_select %p225, %s224, 16
        %s227 = smul.u32 128, %s226
        %p228 = scmp.lt.s32.totalorder %s223, 37
        %s229 = scalar_select %p228, %s223, 37
        %s230 = smul.addr %s229, 8
        %s231 = scalar_lea.vmem %s2, %s230
        %s232 = smul.u32 16, %s14
        %s233 = ssub.s32 38, %s232
        %p234 = scmp.lt.s32.totalorder %s233, 16
        %s235 = scalar_select %p234, %s233, 16
        %s236 = smul.u32 128, %s235
        %s237 = smul.u32 16, %s14
        %s238 = ssub.s32 38, %s237
        %p239 = scmp.lt.s32.totalorder %s238, 16
        %s240 = scalar_select %p239, %s238, 16
        %s241 = smul.u32 128, %s240
        %v242 = vld [vmem:[%s216] sm:$0xff]
        %v243 = vld [vmem:[%s216 + $0x8] sm:$0xff]
        %v244 = vld [vmem:[%s216 + $0x10] sm:$0xff]
        %v245 = vld [vmem:[%s216 + $0x18] sm:$0xff]
        %v246 = vld [vmem:[%s216 + $0x20] sm:$0xff]
        %v247 = vld [vmem:[%s216 + $0x28] sm:$0xff]
        %v248 = vld [vmem:[%s216 + $0x30] sm:$0xff]
        %v249 = vld [vmem:[%s216 + $0x38] sm:$0xff]
        %v250 = vld [vmem:[%s216 + $0x40] sm:$0xff]
        %v251 = vld [vmem:[%s216 + $0x48] sm:$0xff]
        %v252 = vld [vmem:[%s216 + $0x50] sm:$0xff]
        %v253 = vld [vmem:[%s216 + $0x58] sm:$0xff]
        %v254 = vld [vmem:[%s216 + $0x60] sm:$0xff]
        %v255 = vld [vmem:[%s216 + $0x68] sm:$0xff]
        %v256 = vld [vmem:[%s216 + $0x70] sm:$0xff]
        %v257 = vld [vmem:[%s216 + $0x78] sm:$0xff]
        %v258 = vld [vmem:[%s216 + $0x80] sm:$0xff]
        %v259 = vld [vmem:[%s216 + $0x88] sm:$0xff]
        %v260 = vld [vmem:[%s216 + $0x90] sm:$0xff]
        %v261 = vld [vmem:[%s216 + $0x98] sm:$0xff]
        %v262 = vld [vmem:[%s216 + $0xa0] sm:$0xff]
        %v263 = vld [vmem:[%s216 + $0xa8] sm:$0xff]
        %v264 = vld [vmem:[%s216 + $0xb0] sm:$0xff]
        %v265 = vld [vmem:[%s216 + $0xb8] sm:$0xff]
        %v266 = vld [vmem:[%s216 + $0xc0] sm:$0xff]
        %v267 = vld [vmem:[%s216 + $0xc8] sm:$0xff]
        %v268 = vld [vmem:[%s216 + $0xd0] sm:$0xff]
        %v269 = vld [vmem:[%s216 + $0xd8] sm:$0xff]
        %v270 = vld [vmem:[%s216 + $0xe0] sm:$0xff]
        %v271 = vld [vmem:[%s216 + $0xe8] sm:$0xff]
        %v272 = vld [vmem:[%s216 + $0xf0] sm:$0xff]
        %v273 = vld [vmem:[%s216 + $0xf8] sm:$0xff]
        %v274 = vld [vmem:[%s1] sm:$0xff]
        %v275 = vld [vmem:[%s1 + $0x8] sm:$0xff]
        %v276 = vld [vmem:[%s1 + $0x10] sm:$0xff]
        %v277 = vld [vmem:[%s1 + $0x18] sm:$0xff]
        %v278 = vld [vmem:[%s1 + $0x20] sm:$0xff]
        %v279 = vld [vmem:[%s1 + $0x28] sm:$0xff]
        %v280 = vld [vmem:[%s1 + $0x30] sm:$0xff]
        %v281 = vld [vmem:[%s1 + $0x38] sm:$0xff]
        %v282 = vld [vmem:[%s1 + $0x40] sm:$0xff]
        %v283 = vld [vmem:[%s1 + $0x48] sm:$0xff]
        %v284 = vld [vmem:[%s1 + $0x50] sm:$0xff]
        %v285 = vld [vmem:[%s1 + $0x58] sm:$0xff]
        %v286 = vld [vmem:[%s1 + $0x60] sm:$0xff]
        %v287 = vld [vmem:[%s1 + $0x68] sm:$0xff]
        %v288 = vld [vmem:[%s1 + $0x70] sm:$0xff]
        %v289 = vld [vmem:[%s1 + $0x78] sm:$0xff]
        %v290 = vld [vmem:[%s1 + $0x80] sm:$0xff]
        %v291 = vld [vmem:[%s1 + $0x88] sm:$0xff]
        %v292 = vld [vmem:[%s1 + $0x90] sm:$0xff]
        %v293 = vld [vmem:[%s1 + $0x98] sm:$0xff]
        %v294 = vld [vmem:[%s1 + $0xa0] sm:$0xff]
        %v295 = vld [vmem:[%s1 + $0xa8] sm:$0xff]
        %v296 = vld [vmem:[%s1 + $0xb0] sm:$0xff]
        %v297 = vld [vmem:[%s1 + $0xb8] sm:$0xff]
        %v298 = vld [vmem:[%s1 + $0xc0] sm:$0xff]
        %v299 = vld [vmem:[%s1 + $0xc8] sm:$0xff]
        %v300 = vld [vmem:[%s1 + $0xd0] sm:$0xff]
        %v301 = vld [vmem:[%s1 + $0xd8] sm:$0xff]
        %v302 = vld [vmem:[%s1 + $0xe0] sm:$0xff]
        %v303 = vld [vmem:[%s1 + $0xe8] sm:$0xff]
        %v304 = vld [vmem:[%s1 + $0xf0] sm:$0xff]
        %v305 = vld [vmem:[%s1 + $0xf8] sm:$0xff]
        %v306 = vld [vmem:[%s231] sm:$0xff]
        %v307 = vld [vmem:[%s231 + $0x8] sm:$0xff]
        %v308 = vld [vmem:[%s231 + $0x10] sm:$0xff]
        %v309 = vld [vmem:[%s231 + $0x18] sm:$0xff]
        %v310 = vld [vmem:[%s231 + $0x20] sm:$0xff]
        %v311 = vld [vmem:[%s231 + $0x28] sm:$0xff]
        %v312 = vld [vmem:[%s231 + $0x30] sm:$0xff]
        %v313 = vld [vmem:[%s231 + $0x38] sm:$0xff]
        %v314 = vld [vmem:[%s231 + $0x40] sm:$0xff]
        %v315 = vld [vmem:[%s231 + $0x48] sm:$0xff]
        %v316 = vld [vmem:[%s231 + $0x50] sm:$0xff]
        %v317 = vld [vmem:[%s231 + $0x58] sm:$0xff]
        %v318 = vld [vmem:[%s231 + $0x60] sm:$0xff]
        %v319 = vld [vmem:[%s231 + $0x68] sm:$0xff]
        %v320 = vld [vmem:[%s231 + $0x70] sm:$0xff]
        %v321 = vld [vmem:[%s231 + $0x78] sm:$0xff]
        %v322 = vmax.f32 %v242, %v243
        %323 = vmax.xlane.f32.xlu0 %v322
        %v324 = vpop.xlane.xlu0 %323
        %v325 = vmax.f32 %v244, %v245
        %326 = vmax.xlane.f32.xlu0 %v325
        %v327 = vpop.xlane.xlu0 %326
        %v328 = vmax.f32 %v246, %v247
        %329 = vmax.xlane.f32.xlu0 %v328
        %v330 = vpop.xlane.xlu0 %329
        %v331 = vmax.f32 %v248, %v249
        %332 = vmax.xlane.f32.xlu0 %v331
        %v333 = vpop.xlane.xlu0 %332
        %v334 = vmax.f32 %v250, %v251
        %335 = vmax.xlane.f32.xlu0 %v334
        %v336 = vpop.xlane.xlu0 %335
        %v337 = vmax.f32 %v252, %v253
        %338 = vmax.xlane.f32.xlu0 %v337
        %v339 = vpop.xlane.xlu0 %338
        %v340 = vmax.f32 %v254, %v255
        %341 = vmax.xlane.f32.xlu0 %v340
        %v342 = vpop.xlane.xlu0 %341
        %v343 = vmax.f32 %v256, %v257
        %344 = vmax.xlane.f32.xlu0 %v343
        %v345 = vpop.xlane.xlu0 %344
        %v346 = vmax.f32 %v258, %v259
        %347 = vmax.xlane.f32.xlu0 %v346
        %v348 = vpop.xlane.xlu0 %347
        %v349 = vmax.f32 %v260, %v261
        %350 = vmax.xlane.f32.xlu0 %v349
        %v351 = vpop.xlane.xlu0 %350
        %v352 = vmax.f32 %v262, %v263
        %353 = vmax.xlane.f32.xlu0 %v352
        %v354 = vpop.xlane.xlu0 %353
        %v355 = vmax.f32 %v264, %v265
        %356 = vmax.xlane.f32.xlu0 %v355
        %v357 = vpop.xlane.xlu0 %356
        %v358 = vmax.f32 %v266, %v267
        %359 = vmax.xlane.f32.xlu0 %v358
        %v360 = vpop.xlane.xlu0 %359
        %v361 = vmax.f32 %v268, %v269
        %362 = vmax.xlane.f32.xlu0 %v361
        %v363 = vpop.xlane.xlu0 %362
        %v364 = vmax.f32 %v270, %v271
        %365 = vmax.xlane.f32.xlu0 %v364
        %v366 = vpop.xlane.xlu0 %365
        %v367 = vmax.f32 %v272, %v273
        %368 = vmax.xlane.f32.xlu0 %v367
        %v369 = vpop.xlane.xlu0 %368
        %v370 = vsub.f32 %v242, %v324
        %v371 = vsub.f32 %v243, %v324
        %v372 = vsub.f32 %v244, %v327
        %v373 = vsub.f32 %v245, %v327
        %v374 = vsub.f32 %v246, %v330
        %v375 = vsub.f32 %v247, %v330
        %v376 = vsub.f32 %v248, %v333
        %v377 = vsub.f32 %v249, %v333
        %v378 = vsub.f32 %v250, %v336
        %v379 = vsub.f32 %v251, %v336
        %v380 = vsub.f32 %v252, %v339
        %v381 = vsub.f32 %v253, %v339
        %v382 = vsub.f32 %v254, %v342
        %v383 = vsub.f32 %v255, %v342
        %v384 = vsub.f32 %v256, %v345
        %v385 = vsub.f32 %v257, %v345
        %v386 = vsub.f32 %v258, %v348
        %v387 = vsub.f32 %v259, %v348
        %v388 = vsub.f32 %v260, %v351
        %v389 = vsub.f32 %v261, %v351
        %v390 = vsub.f32 %v262, %v354
        %v391 = vsub.f32 %v263, %v354
        %v392 = vsub.f32 %v264, %v357
        %v393 = vsub.f32 %v265, %v357
        %v394 = vsub.f32 %v266, %v360
        %v395 = vsub.f32 %v267, %v360
        %v396 = vsub.f32 %v268, %v363
        %v397 = vsub.f32 %v269, %v363
        %v398 = vsub.f32 %v270, %v366
        %v399 = vsub.f32 %v271, %v366
        %v400 = vsub.f32 %v272, %v369
        %v401 = vsub.f32 %v273, %v369
        %v402 = vmul.f32 %v370, 1.442695
        %v403 = vpow.pop %v402
        %v404 = vmul.f32 %v371, 1.442695
        %v405 = vpow.pop %v404
        %v406 = vmul.f32 %v372, 1.442695
        %v407 = vpow.pop %v406
        %v408 = vmul.f32 %v373, 1.442695
        %v409 = vpow.pop %v408
        %v410 = vmul.f32 %v374, 1.442695
        %v411 = vpow.pop %v410
        %v412 = vmul.f32 %v375, 1.442695
        %v413 = vpow.pop %v412
        %v414 = vmul.f32 %v376, 1.442695
        %v415 = vpow.pop %v414
        %v416 = vmul.f32 %v377, 1.442695
        %v417 = vpow.pop %v416
        %v418 = vmul.f32 %v378, 1.442695
        %v419 = vpow.pop %v418
        %v420 = vmul.f32 %v379, 1.442695
        %v421 = vpow.pop %v420
        %v422 = vmul.f32 %v380, 1.442695
        %v423 = vpow.pop %v422
        %v424 = vmul.f32 %v381, 1.442695
        %v425 = vpow.pop %v424
        %v426 = vmul.f32 %v382, 1.442695
        %v427 = vpow.pop %v426
        %v428 = vmul.f32 %v383, 1.442695
        %v429 = vpow.pop %v428
        %v430 = vmul.f32 %v384, 1.442695
        %v431 = vpow.pop %v430
        %v432 = vmul.f32 %v385, 1.442695
        %v433 = vpow.pop %v432
        %v434 = vmul.f32 %v386, 1.442695
        %v435 = vpow.pop %v434
        %v436 = vmul.f32 %v387, 1.442695
        %v437 = vpow.pop %v436
        %v438 = vmul.f32 %v388, 1.442695
        %v439 = vpow.pop %v438
        %v440 = vmul.f32 %v389, 1.442695
        %v441 = vpow.pop %v440
        %v442 = vmul.f32 %v390, 1.442695
        %v443 = vpow.pop %v442
        %v444 = vmul.f32 %v391, 1.442695
        %v445 = vpow.pop %v444
        %v446 = vmul.f32 %v392, 1.442695
        %v447 = vpow.pop %v446
        %v448 = vmul.f32 %v393, 1.442695
        %v449 = vpow.pop %v448
        %v450 = vmul.f32 %v394, 1.442695
        %v451 = vpow.pop %v450
        %v452 = vmul.f32 %v395, 1.442695
        %v453 = vpow.pop %v452
        %v454 = vmul.f32 %v396, 1.442695
        %v455 = vpow.pop %v454
        %v456 = vmul.f32 %v397, 1.442695
        %v457 = vpow.pop %v456
        %v458 = vmul.f32 %v398, 1.442695
        %v459 = vpow.pop %v458
        %v460 = vmul.f32 %v399, 1.442695
        %v461 = vpow.pop %v460
        %v462 = vmul.f32 %v400, 1.442695
        %v463 = vpow.pop %v462
        %v464 = vmul.f32 %v401, 1.442695
        %v465 = vpow.pop %v464
        %466 = vmatprep.subr.mxu0 0.0
        %467 = vmatpush1.msra.mxu0 %v289
        %468 = vmatprep.subr.mxu0 0.0
        %469 = vmatpush1.msra.mxu0 %v288
        %470 = vmatprep.subr.mxu0 0.0
        %471 = vmatpush1.msra.mxu0 %v287
        %472 = vmatprep.subr.mxu0 0.0
        %473 = vmatpush1.msra.mxu0 %v286
        %474 = vmatprep.subr.mxu0 0.0
        %475 = vmatpush1.msra.mxu0 %v285
        %476 = vmatprep.subr.mxu0 0.0
        %477 = vmatpush1.msra.mxu0 %v284
        %478 = vmatprep.subr.mxu0 0.0
        %479 = vmatpush1.msra.mxu0 %v283
        %480 = vmatprep.subr.mxu0 0.0
        %481 = vmatpush1.msra.mxu0 %v282
        %482 = vmatprep.subr.mxu0 0.0
        %483 = vmatpush1.msra.mxu0 %v281
        %484 = vmatprep.subr.mxu0 0.0
        %485 = vmatpush1.msra.mxu0 %v280
        %486 = vmatprep.subr.mxu0 0.0
        %487 = vmatpush1.msra.mxu0 %v279
        %488 = vmatprep.subr.mxu0 0.0
        %489 = vmatpush1.msra.mxu0 %v278
        %490 = vmatprep.subr.mxu0 0.0
        %491 = vmatpush1.msra.mxu0 %v277
        %492 = vmatprep.subr.mxu0 0.0
        %493 = vmatpush1.msra.mxu0 %v276
        %494 = vmatprep.subr.mxu0 0.0
        %495 = vmatpush1.msra.mxu0 %v275
        %496 = vmatprep.subr.mxu0 0.0
        %497 = vmatpush1.msra.mxu0 %v274
        %498 = vmatprep.subr.mxu0 0.0
        %499 = vmatpush2.msra.mxu0 %v305
        %500 = vmatprep.subr.mxu0 0.0
        %501 = vmatpush2.msra.mxu0 %v304
        %502 = vmatprep.subr.mxu0 0.0
        %503 = vmatpush2.msra.mxu0 %v303
        %504 = vmatprep.subr.mxu0 0.0
        %505 = vmatpush2.msra.mxu0 %v302
        %506 = vmatprep.subr.mxu0 0.0
        %507 = vmatpush2.msra.mxu0 %v301
        %508 = vmatprep.subr.mxu0 0.0
        %509 = vmatpush2.msra.mxu0 %v300
        %510 = vmatprep.subr.mxu0 0.0
        %511 = vmatpush2.msra.mxu0 %v299
        %512 = vmatprep.subr.mxu0 0.0
        %513 = vmatpush2.msra.mxu0 %v298
        %514 = vmatprep.subr.mxu0 0.0
        %515 = vmatpush2.msra.mxu0 %v297
        %516 = vmatprep.subr.mxu0 0.0
        %517 = vmatpush2.msra.mxu0 %v296
        %518 = vmatprep.subr.mxu0 0.0
        %519 = vmatpush2.msra.mxu0 %v295
        %520 = vmatprep.subr.mxu0 0.0
        %521 = vmatpush2.msra.mxu0 %v294
        %522 = vmatprep.subr.mxu0 0.0
        %523 = vmatpush2.msra.mxu0 %v293
        %524 = vmatprep.subr.mxu0 0.0
        %525 = vmatpush2.msra.mxu0 %v292
        %526 = vmatprep.subr.mxu0 0.0
        %527 = vmatpush2.msra.mxu0 %v291
        %528 = vmatprep.subr.mxu0 0.0
        %529 = vmatpush2.msra.mxu0 %v290
        %530 = vmatprep.mubr.f32.mxu0 %v405
        %531 = vmatmul.mubr.f32.gmra.mxu0 %v403
        %v532 = vpop.f32.mrf.mxu0
        %v533 = vadd.f32 0.0, %v532
        %v534 = vpop.f32.mrf.mxu0
        %535 = vmatprep.mubr.f32.mxu0 %v409
        %536 = vmatmul.mubr.f32.gmra.mxu0 %v407
        %v537 = vpop.f32.mrf.mxu0
        %v538 = vadd.f32 0.0, %v537
        %v539 = vpop.f32.mrf.mxu0
        %540 = vmatprep.mubr.f32.mxu0 %v413
        %541 = vmatmul.mubr.f32.gmra.mxu0 %v411
        %v542 = vpop.f32.mrf.mxu0
        %v543 = vadd.f32 0.0, %v542
        %v544 = vpop.f32.mrf.mxu0
        %545 = vmatprep.mubr.f32.mxu0 %v417
        %546 = vmatmul.mubr.f32.gmra.mxu0 %v415
        %v547 = vpop.f32.mrf.mxu0
        %v548 = vadd.f32 0.0, %v547
        %v549 = vpop.f32.mrf.mxu0
        %550 = vmatprep.mubr.f32.mxu0 %v421
        %551 = vmatmul.mubr.f32.gmra.mxu0 %v419
        %v552 = vpop.f32.mrf.mxu0
        %v553 = vadd.f32 0.0, %v552
        %v554 = vpop.f32.mrf.mxu0
        %555 = vmatprep.mubr.f32.mxu0 %v425
        %556 = vmatmul.mubr.f32.gmra.mxu0 %v423
        %v557 = vpop.f32.mrf.mxu0
        %v558 = vadd.f32 0.0, %v557
        %v559 = vpop.f32.mrf.mxu0
        %560 = vmatprep.mubr.f32.mxu0 %v429
        %561 = vmatmul.mubr.f32.gmra.mxu0 %v427
        %v562 = vpop.f32.mrf.mxu0
        %v563 = vadd.f32 0.0, %v562
        %v564 = vpop.f32.mrf.mxu0
        %565 = vmatprep.mubr.f32.mxu0 %v433
        %566 = vmatmul.mubr.f32.gmra.mxu0 %v431
        %v567 = vpop.f32.mrf.mxu0
        %v568 = vadd.f32 0.0, %v567
        %v569 = vpop.f32.mrf.mxu0
        %570 = vmatprep.mubr.f32.mxu0 %v437
        %571 = vmatmul.mubr.f32.gmra.mxu0 %v435
        %v572 = vpop.f32.mrf.mxu0
        %v573 = vadd.f32 0.0, %v572
        %v574 = vpop.f32.mrf.mxu0
        %575 = vmatprep.mubr.f32.mxu0 %v441
        %576 = vmatmul.mubr.f32.gmra.mxu0 %v439
        %v577 = vpop.f32.mrf.mxu0
        %v578 = vadd.f32 0.0, %v577
        %v579 = vpop.f32.mrf.mxu0
        %580 = vmatprep.mubr.f32.mxu0 %v445
        %581 = vmatmul.mubr.f32.gmra.mxu0 %v443
        %v582 = vpop.f32.mrf.mxu0
        %v583 = vadd.f32 0.0, %v582
        %v584 = vpop.f32.mrf.mxu0
        %585 = vmatprep.mubr.f32.mxu0 %v449
        %586 = vmatmul.mubr.f32.gmra.mxu0 %v447
        %v587 = vpop.f32.mrf.mxu0
        %v588 = vadd.f32 0.0, %v587
        %v589 = vpop.f32.mrf.mxu0
        %590 = vmatprep.mubr.f32.mxu0 %v453
        %591 = vmatmul.mubr.f32.gmra.mxu0 %v451
        %v592 = vpop.f32.mrf.mxu0
        %v593 = vadd.f32 0.0, %v592
        %v594 = vpop.f32.mrf.mxu0
        %595 = vmatprep.mubr.f32.mxu0 %v457
        %596 = vmatmul.mubr.f32.gmra.mxu0 %v455
        %v597 = vpop.f32.mrf.mxu0
        %v598 = vadd.f32 0.0, %v597
        %v599 = vpop.f32.mrf.mxu0
        %600 = vmatprep.mubr.f32.mxu0 %v461
        %601 = vmatmul.mubr.f32.gmra.mxu0 %v459
        %v602 = vpop.f32.mrf.mxu0
        %v603 = vadd.f32 0.0, %v602
        %v604 = vpop.f32.mrf.mxu0
        %605 = vmatprep.mubr.f32.mxu0 %v465
        %606 = vmatmul.mubr.f32.gmra.mxu0 %v463
        %v607 = vpop.f32.mrf.mxu0
        %v608 = vadd.f32 0.0, %v607
        %v609 = vpop.f32.mrf.mxu0
        %610 = vdwg.mxu0
        %v611 = vlaneseq
        %v612 = vand.u32 %v611, 127
        %613 = vset.pattern.permute.xlu0 0
        %614 = vperm.xlu0 %613, %v306
        %v615 = vpop.permute.xlu0 %614
        %616 = vset.pattern.permute.xlu0 0
        %617 = vperm.xlu0 %616, %v307
        %v618 = vpop.permute.xlu0 %617
        %619 = vset.pattern.permute.xlu0 0
        %620 = vperm.xlu0 %619, %v308
        %v621 = vpop.permute.xlu0 %620
        %622 = vset.pattern.permute.xlu0 0
        %623 = vperm.xlu0 %622, %v309
        %v624 = vpop.permute.xlu0 %623
        %625 = vset.pattern.permute.xlu0 0
        %626 = vperm.xlu0 %625, %v310
        %v627 = vpop.permute.xlu0 %626
        %628 = vset.pattern.permute.xlu0 0
        %629 = vperm.xlu0 %628, %v311
        %v630 = vpop.permute.xlu0 %629
        %631 = vset.pattern.permute.xlu0 0
        %632 = vperm.xlu0 %631, %v312
        %v633 = vpop.permute.xlu0 %632
        %634 = vset.pattern.permute.xlu0 0
        %635 = vperm.xlu0 %634, %v313
        %v636 = vpop.permute.xlu0 %635
        %637 = vset.pattern.permute.xlu0 0
        %638 = vperm.xlu0 %637, %v314
        %v639 = vpop.permute.xlu0 %638
        %640 = vset.pattern.permute.xlu0 0
        %641 = vperm.xlu0 %640, %v315
        %v642 = vpop.permute.xlu0 %641
        %643 = vset.pattern.permute.xlu0 0
        %644 = vperm.xlu0 %643, %v316
        %v645 = vpop.permute.xlu0 %644
        %646 = vset.pattern.permute.xlu0 0
        %647 = vperm.xlu0 %646, %v317
        %v648 = vpop.permute.xlu0 %647
        %649 = vset.pattern.permute.xlu0 0
        %650 = vperm.xlu0 %649, %v318
        %v651 = vpop.permute.xlu0 %650
        %652 = vset.pattern.permute.xlu0 0
        %653 = vperm.xlu0 %652, %v319
        %v654 = vpop.permute.xlu0 %653
        %655 = vset.pattern.permute.xlu0 0
        %656 = vperm.xlu0 %655, %v320
        %v657 = vpop.permute.xlu0 %656
        %658 = vset.pattern.permute.xlu0 0
        %659 = vperm.xlu0 %658, %v321
        %v660 = vpop.permute.xlu0 %659
        %vm661 = vcmp.eq.s32.totalorder %v612, %v615
        %vm662 = vcmp.eq.s32.totalorder %v612, %v618
        %vm663 = vcmp.eq.s32.totalorder %v612, %v621
        %vm664 = vcmp.eq.s32.totalorder %v612, %v624
        %vm665 = vcmp.eq.s32.totalorder %v612, %v627
        %vm666 = vcmp.eq.s32.totalorder %v612, %v630
        %vm667 = vcmp.eq.s32.totalorder %v612, %v633
        %vm668 = vcmp.eq.s32.totalorder %v612, %v636
        %vm669 = vcmp.eq.s32.totalorder %v612, %v639
        %vm670 = vcmp.eq.s32.totalorder %v612, %v642
        %vm671 = vcmp.eq.s32.totalorder %v612, %v645
        %vm672 = vcmp.eq.s32.totalorder %v612, %v648
        %vm673 = vcmp.eq.s32.totalorder %v612, %v651
        %vm674 = vcmp.eq.s32.totalorder %v612, %v654
        %vm675 = vcmp.eq.s32.totalorder %v612, %v657
        %vm676 = vcmp.eq.s32.totalorder %v612, %v660
        %v677 = vsel %vm661, %v533, 0.0
        %v678 = vsel %vm662, %v538, 0.0
        %v679 = vsel %vm663, %v543, 0.0
        %v680 = vsel %vm664, %v548, 0.0
        %v681 = vsel %vm665, %v553, 0.0
        %v682 = vsel %vm666, %v558, 0.0
        %v683 = vsel %vm667, %v563, 0.0
        %v684 = vsel %vm668, %v568, 0.0
        %v685 = vsel %vm669, %v573, 0.0
        %v686 = vsel %vm670, %v578, 0.0
        %v687 = vsel %vm671, %v583, 0.0
        %v688 = vsel %vm672, %v588, 0.0
        %v689 = vsel %vm673, %v593, 0.0
        %v690 = vsel %vm674, %v598, 0.0
        %v691 = vsel %vm675, %v603, 0.0
        %v692 = vsel %vm676, %v608, 0.0
        %vm693 = vcmask 138240
        %v694 = vsel %vm693, %v677, 0.0
        %695 = vadd.xlane.f32.xlu0 %v694
        %v696 = vpop.xlane.xlu0 %695
        %v697 = vsel %vm693, %v678, 0.0
        %698 = vadd.xlane.f32.xlu0 %v697
        %v699 = vpop.xlane.xlu0 %698
        %v700 = vsel %vm693, %v679, 0.0
        %701 = vadd.xlane.f32.xlu0 %v700
        %v702 = vpop.xlane.xlu0 %701
        %v703 = vsel %vm693, %v680, 0.0
        %704 = vadd.xlane.f32.xlu0 %v703
        %v705 = vpop.xlane.xlu0 %704
        %v706 = vsel %vm693, %v681, 0.0
        %707 = vadd.xlane.f32.xlu0 %v706
        %v708 = vpop.xlane.xlu0 %707
        %v709 = vsel %vm693, %v682, 0.0
        %710 = vadd.xlane.f32.xlu0 %v709
        %v711 = vpop.xlane.xlu0 %710
        %v712 = vsel %vm693, %v683, 0.0
        %713 = vadd.xlane.f32.xlu0 %v712
        %v714 = vpop.xlane.xlu0 %713
        %v715 = vsel %vm693, %v684, 0.0
        %716 = vadd.xlane.f32.xlu0 %v715
        %v717 = vpop.xlane.xlu0 %716
        %v718 = vsel %vm693, %v685, 0.0
        %719 = vadd.xlane.f32.xlu0 %v718
        %v720 = vpop.xlane.xlu0 %719
        %v721 = vsel %vm693, %v686, 0.0
        %722 = vadd.xlane.f32.xlu0 %v721
        %v723 = vpop.xlane.xlu0 %722
        %v724 = vsel %vm693, %v687, 0.0
        %725 = vadd.xlane.f32.xlu0 %v724
        %v726 = vpop.xlane.xlu0 %725
        %v727 = vsel %vm693, %v688, 0.0
        %728 = vadd.xlane.f32.xlu0 %v727
        %v729 = vpop.xlane.xlu0 %728
        %v730 = vsel %vm693, %v689, 0.0
        %731 = vadd.xlane.f32.xlu0 %v730
        %v732 = vpop.xlane.xlu0 %731
        %v733 = vsel %vm693, %v690, 0.0
        %734 = vadd.xlane.f32.xlu0 %v733
        %v735 = vpop.xlane.xlu0 %734
        %v736 = vsel %vm693, %v691, 0.0
        %737 = vadd.xlane.f32.xlu0 %v736
        %v738 = vpop.xlane.xlu0 %737
        %v739 = vsel %vm693, %v692, 0.0
        %740 = vadd.xlane.f32.xlu0 %v739
        %v741 = vpop.xlane.xlu0 %740
        %v742 = vmul.f32 %v533, 1e-10
        %v743 = vmul.f32 %v538, 1e-10
        %v744 = vmul.f32 %v543, 1e-10
        %v745 = vmul.f32 %v548, 1e-10
        %v746 = vmul.f32 %v553, 1e-10
        %v747 = vmul.f32 %v558, 1e-10
        %v748 = vmul.f32 %v563, 1e-10
        %v749 = vmul.f32 %v568, 1e-10
        %v750 = vmul.f32 %v573, 1e-10
        %v751 = vmul.f32 %v578, 1e-10
        %v752 = vmul.f32 %v583, 1e-10
        %v753 = vmul.f32 %v588, 1e-10
        %v754 = vmul.f32 %v593, 1e-10
        %v755 = vmul.f32 %v598, 1e-10
        %v756 = vmul.f32 %v603, 1e-10
        %v757 = vmul.f32 %v608, 1e-10
        %v758 = vadd.f32 %v696, %v742
        %v759 = vadd.f32 %v699, %v743
        %v760 = vadd.f32 %v702, %v744
        %v761 = vadd.f32 %v705, %v745
        %v762 = vadd.f32 %v708, %v746
        %v763 = vadd.f32 %v711, %v747
        %v764 = vadd.f32 %v714, %v748
        %v765 = vadd.f32 %v717, %v749
        %v766 = vadd.f32 %v720, %v750
        %v767 = vadd.f32 %v723, %v751
        %v768 = vadd.f32 %v726, %v752
        %v769 = vadd.f32 %v729, %v753
        %v770 = vadd.f32 %v732, %v754
        %v771 = vadd.f32 %v735, %v755
        %v772 = vadd.f32 %v738, %v756
        %v773 = vadd.f32 %v741, %v757
        %v774 = vlog2.pop %v758
        %v775 = vmul.f32 %v774, 0.6931472
        %v776 = vlog2.pop %v759
        %v777 = vmul.f32 %v776, 0.6931472
        %v778 = vlog2.pop %v760
        %v779 = vmul.f32 %v778, 0.6931472
        %v780 = vlog2.pop %v761
        %v781 = vmul.f32 %v780, 0.6931472
        %v782 = vlog2.pop %v762
        %v783 = vmul.f32 %v782, 0.6931472
        %v784 = vlog2.pop %v763
        %v785 = vmul.f32 %v784, 0.6931472
        %v786 = vlog2.pop %v764
        %v787 = vmul.f32 %v786, 0.6931472
        %v788 = vlog2.pop %v765
        %v789 = vmul.f32 %v788, 0.6931472
        %v790 = vlog2.pop %v766
        %v791 = vmul.f32 %v790, 0.6931472
        %v792 = vlog2.pop %v767
        %v793 = vmul.f32 %v792, 0.6931472
        %v794 = vlog2.pop %v768
        %v795 = vmul.f32 %v794, 0.6931472
        %v796 = vlog2.pop %v769
        %v797 = vmul.f32 %v796, 0.6931472
        %v798 = vlog2.pop %v770
        %v799 = vmul.f32 %v798, 0.6931472
        %v800 = vlog2.pop %v771
        %v801 = vmul.f32 %v800, 0.6931472
        %v802 = vlog2.pop %v772
        %v803 = vmul.f32 %v802, 0.6931472
        %v804 = vlog2.pop %v773
        %v805 = vmul.f32 %v804, 0.6931472
        %v806 = vlog2.pop %v533
        %v807 = vmul.f32 %v806, 0.6931472
        %v808 = vlog2.pop %v538
        %v809 = vmul.f32 %v808, 0.6931472
        %v810 = vlog2.pop %v543
        %v811 = vmul.f32 %v810, 0.6931472
        %v812 = vlog2.pop %v548
        %v813 = vmul.f32 %v812, 0.6931472
        %v814 = vlog2.pop %v553
        %v815 = vmul.f32 %v814, 0.6931472
        %v816 = vlog2.pop %v558
        %v817 = vmul.f32 %v816, 0.6931472
        %v818 = vlog2.pop %v563
        %v819 = vmul.f32 %v818, 0.6931472
        %v820 = vlog2.pop %v568
        %v821 = vmul.f32 %v820, 0.6931472
        %v822 = vlog2.pop %v573
        %v823 = vmul.f32 %v822, 0.6931472
        %v824 = vlog2.pop %v578
        %v825 = vmul.f32 %v824, 0.6931472
        %v826 = vlog2.pop %v583
        %v827 = vmul.f32 %v826, 0.6931472
        %v828 = vlog2.pop %v588
        %v829 = vmul.f32 %v828, 0.6931472
        %v830 = vlog2.pop %v593
        %v831 = vmul.f32 %v830, 0.6931472
        %v832 = vlog2.pop %v598
        %v833 = vmul.f32 %v832, 0.6931472
        %v834 = vlog2.pop %v603
        %v835 = vmul.f32 %v834, 0.6931472
        %v836 = vlog2.pop %v608
        %v837 = vmul.f32 %v836, 0.6931472
        %v838 = vsub.f32 %v775, %v807
        %v839 = vsub.f32 %v777, %v809
        %v840 = vsub.f32 %v779, %v811
        %v841 = vsub.f32 %v781, %v813
        %v842 = vsub.f32 %v783, %v815
        %v843 = vsub.f32 %v785, %v817
        %v844 = vsub.f32 %v787, %v819
        %v845 = vsub.f32 %v789, %v821
        %v846 = vsub.f32 %v791, %v823
        %v847 = vsub.f32 %v793, %v825
        %v848 = vsub.f32 %v795, %v827
        %v849 = vsub.f32 %v797, %v829
        %v850 = vsub.f32 %v799, %v831
        %v851 = vsub.f32 %v801, %v833
        %v852 = vsub.f32 %v803, %v835
        %v853 = vsub.f32 %v805, %v837
        %870 = vrot.lane.b32.xlu0 %v838, 112
        %v871 = vpop.permute.xlu0 %870
        %872 = vrot.lane.b32.xlu0 %v839, 112
        %v873 = vpop.permute.xlu0 %872
        %874 = vrot.lane.b32.xlu0 %v840, 112
        %v875 = vpop.permute.xlu0 %874
        %876 = vrot.lane.b32.xlu0 %v841, 112
        %v877 = vpop.permute.xlu0 %876
        %878 = vrot.lane.b32.xlu0 %v842, 112
        %v879 = vpop.permute.xlu0 %878
        %880 = vrot.lane.b32.xlu0 %v843, 112
        %v881 = vpop.permute.xlu0 %880
        %882 = vrot.lane.b32.xlu0 %v844, 112
        %v883 = vpop.permute.xlu0 %882
        %884 = vrot.lane.b32.xlu0 %v845, 112
        %v885 = vpop.permute.xlu0 %884
        %886 = vrot.lane.b32.xlu0 %v846, 112
        %v887 = vpop.permute.xlu0 %886
        %888 = vrot.lane.b32.xlu0 %v847, 112
        %v889 = vpop.permute.xlu0 %888
        %890 = vrot.lane.b32.xlu0 %v848, 112
        %v891 = vpop.permute.xlu0 %890
        %892 = vrot.lane.b32.xlu0 %v849, 112
        %v893 = vpop.permute.xlu0 %892
        %894 = vrot.lane.b32.xlu0 %v850, 112
        %v895 = vpop.permute.xlu0 %894
        %896 = vrot.lane.b32.xlu0 %v851, 112
        %v897 = vpop.permute.xlu0 %896
        %898 = vrot.lane.b32.xlu0 %v852, 112
        %v899 = vpop.permute.xlu0 %898
        %900 = vrot.lane.b32.xlu0 %v853, 112
        %v901 = vpop.permute.xlu0 %900
        %vm918 = vcmask 7168
        %919 = vst.msk [vmem:[%s205] sm:$0xff] %vm918, %v871
        %920 = vst.msk [vmem:[%s205 + $0x8] sm:$0xff] %vm918, %v873
        %921 = vst.msk [vmem:[%s205 + $0x10] sm:$0xff] %vm918, %v875
        %922 = vst.msk [vmem:[%s205 + $0x18] sm:$0xff] %vm918, %v877
        %923 = vst.msk [vmem:[%s205 + $0x20] sm:$0xff] %vm918, %v879
        %924 = vst.msk [vmem:[%s205 + $0x28] sm:$0xff] %vm918, %v881
        %925 = vst.msk [vmem:[%s205 + $0x30] sm:$0xff] %vm918, %v883
        %926 = vst.msk [vmem:[%s205 + $0x38] sm:$0xff] %vm918, %v885
        %927 = vst.msk [vmem:[%s205 + $0x40] sm:$0xff] %vm918, %v887
        %928 = vst.msk [vmem:[%s205 + $0x48] sm:$0xff] %vm918, %v889
        %929 = vst.msk [vmem:[%s205 + $0x50] sm:$0xff] %vm918, %v891
        %930 = vst.msk [vmem:[%s205 + $0x58] sm:$0xff] %vm918, %v893
        %931 = vst.msk [vmem:[%s205 + $0x60] sm:$0xff] %vm918, %v895
        %932 = vst.msk [vmem:[%s205 + $0x68] sm:$0xff] %vm918, %v897
        %933 = vst.msk [vmem:[%s205 + $0x70] sm:$0xff] %vm918, %v899
        %934 = vst.msk [vmem:[%s205 + $0x78] sm:$0xff] %vm918, %v901
        %s935 = sand.u32 %s95, 1
        %s936 = sand.u32 %s95, 1
        %s937 = smul.addr %s936, 128
        %s938 = scalar_lea.vmem [#allocation2], %s937
        // Predicated region
        $region33: #{tpu_custom_call.1} parent=31 // pred_check
          %p939 = pneg %p105
        $region34: #{tpu_custom_call.1} parent=31 // pred_check_branch
          %941 = sbr.rel (%p939) target = $region36
        $region35: #{tpu_custom_call.1} parent=31 // pred_region
          %s942 = smul.u32 16, %s14
          %s943 = ssub.s32 38, %s942
          %p944 = scmp.lt.s32.totalorder %s943, 16
          %s945 = scalar_select %p944, %s943, 16
          %s946 = smul.u32 128, %s945
          %p947 = scmp.ne.s32.totalorder 0, %s946
          %s948 = smul.addr %s942, 8
          %s949 = scalar_lea.vmem %s3, %s948
          // Predicated region
          $region37: #{tpu_custom_call.1} parent=35 // pred_check
            %p950 = pneg %p947
          $region38: #{tpu_custom_call.1} parent=35 // pred_check_branch
            %952 = sbr.rel (%p950) target = $region40
          $region39: #{tpu_custom_call.1} parent=35 // pred_region
            // Predicated region
            $region41: #{tpu_custom_call.1} parent=39 // pred_check
              _
            $region42: #{tpu_custom_call.1} parent=39 // pred_check_branch
              %954 = sbr.rel (0) target = $region44
            $region43: #{tpu_custom_call.1} parent=39 // pred_region
              // Predicated region
              $region63: #{tpu_custom_call.1} parent=43 // pred_check
                _
              $region64: #{tpu_custom_call.1} parent=43 // pred_check_branch
                %1034 = sbr.rel (0) target = $region66
              $region65: #{tpu_custom_call.1} parent=43 // pred_region
                %s1035 = sshrl.u32 %s945, 4
                // While loop
                $region67: #{tpu_custom_call.1} parent=65 // loop_pre_header
                  _
                $region68: #{tpu_custom_call.1} parent=65 // loop_header
                  %s1037 = sphi 0, %s1039
                  %p1038 = scmp.ge.s32.totalorder %s1037, %s1035
                  %s1042 = sphi 0, %s1079
                  %s1043 = sphi %s938, %s1082
                  %s1044 = sphi %s949, %s1083
                $region69: #{tpu_custom_call.1} parent=65 // loop_header_branch
                  %1041 = sbr.rel (%p1038) target = $region73
                $region70: #{tpu_custom_call.1} parent=65 // loop_body
                  %v1045 = vld [vmem:[%s1043] sm:$0xff]
                  %1046 = vst [vmem:[%s1044] sm:$0xff] %v1045
                  %v1047 = vld [vmem:[%s1043 + $0x8] sm:$0xff]
                  %1048 = vst [vmem:[%s1044 + $0x8] sm:$0xff] %v1047
                  %v1049 = vld [vmem:[%s1043 + $0x10] sm:$0xff]
                  %1050 = vst [vmem:[%s1044 + $0x10] sm:$0xff] %v1049
                  %v1051 = vld [vmem:[%s1043 + $0x18] sm:$0xff]
                  %1052 = vst [vmem:[%s1044 + $0x18] sm:$0xff] %v1051
                  %v1053 = vld [vmem:[%s1043 + $0x20] sm:$0xff]
                  %1054 = vst [vmem:[%s1044 + $0x20] sm:$0xff] %v1053
                  %v1055 = vld [vmem:[%s1043 + $0x28] sm:$0xff]
                  %1056 = vst [vmem:[%s1044 + $0x28] sm:$0xff] %v1055
                  %v1057 = vld [vmem:[%s1043 + $0x30] sm:$0xff]
                  %1058 = vst [vmem:[%s1044 + $0x30] sm:$0xff] %v1057
                  %v1059 = vld [vmem:[%s1043 + $0x38] sm:$0xff]
                  %1060 = vst [vmem:[%s1044 + $0x38] sm:$0xff] %v1059
                  %v1061 = vld [vmem:[%s1043 + $0x40] sm:$0xff]
                  %1062 = vst [vmem:[%s1044 + $0x40] sm:$0xff] %v1061
                  %v1063 = vld [vmem:[%s1043 + $0x48] sm:$0xff]
                  %1064 = vst [vmem:[%s1044 + $0x48] sm:$0xff] %v1063
                  %v1065 = vld [vmem:[%s1043 + $0x50] sm:$0xff]
                  %1066 = vst [vmem:[%s1044 + $0x50] sm:$0xff] %v1065
                  %v1067 = vld [vmem:[%s1043 + $0x58] sm:$0xff]
                  %1068 = vst [vmem:[%s1044 + $0x58] sm:$0xff] %v1067
                  %v1069 = vld [vmem:[%s1043 + $0x60] sm:$0xff]
                  %1070 = vst [vmem:[%s1044 + $0x60] sm:$0xff] %v1069
                  %v1071 = vld [vmem:[%s1043 + $0x68] sm:$0xff]
                  %1072 = vst [vmem:[%s1044 + $0x68] sm:$0xff] %v1071
                  %v1073 = vld [vmem:[%s1043 + $0x70] sm:$0xff]
                  %1074 = vst [vmem:[%s1044 + $0x70] sm:$0xff] %v1073
                  %v1075 = vld [vmem:[%s1043 + $0x78] sm:$0xff]
                  %1076 = vst [vmem:[%s1044 + $0x78] sm:$0xff] %v1075
                  %s1077 = sadd.s32 1, %s1042
                  %p1078 = scmp.ge.s32.totalorder %s1077, %s1035
                  %s1079 = scalar_select %p1078, 0, %s1077
                  %s1080 = smul.u32 %s1079, 128
                  %s1081 = smul.u32 %s1079, 128
                  %s1082 = scalar_lea.vmem %s938, %s1080 [#allocation2]
                  %s1083 = scalar_lea.vmem %s949, %s1081
                $region71: #{tpu_custom_call.1} parent=65 // loop_footer
                  %s1039 = sadd.s32 %s1037, 1
                $region72: #{tpu_custom_call.1} parent=65 // loop_footer_branch
                  %1036 = sbr.rel target = $region68
                $region73: #{tpu_custom_call.1} parent=65 // loop_exit
                  _
                %s1084 = sshrl.u32 %s945, 4
                %s1085 = sand.u32 %s945, 15
                %s1086 = smul.u32 %s1084, 16
                %s1087 = smul.u32 8, %s1086
                %s1088 = scalar_lea.vmem %s938, %s1087 [#allocation2]
                %s1089 = smul.u32 8, %s1086
                %s1090 = scalar_lea.vmem %s949, %s1089
                // While loop
                $region74: #{tpu_custom_call.1} parent=65 // loop_pre_header
                  _
                $region75: #{tpu_custom_call.1} parent=65 // loop_header
                  %s1092 = sphi 0, %s1094
                  %p1093 = scmp.ge.s32.totalorder %s1092, %s1085
                  %s1097 = sphi 0, %s1104
                  %s1098 = sphi %s1088, %s1107
                  %s1099 = sphi %s1090, %s1108
                $region76: #{tpu_custom_call.1} parent=65 // loop_header_branch
                  %1096 = sbr.rel (%p1093) target = $region80
                $region77: #{tpu_custom_call.1} parent=65 // loop_body
                  %v1100 = vld [vmem:[%s1098] sm:$0xff]
                  %1101 = vst [vmem:[%s1099] sm:$0xff] %v1100
                  %s1102 = sadd.s32 1, %s1097
                  %p1103 = scmp.ge.s32.totalorder %s1102, %s1085
                  %s1104 = scalar_select %p1103, 0, %s1102
                  %s1105 = smul.u32 %s1104, 8
                  %s1106 = smul.u32 %s1104, 8
                  %s1107 = scalar_lea.vmem %s1088, %s1105 [#allocation2]
                  %s1108 = scalar_lea.vmem %s1090, %s1106
                $region78: #{tpu_custom_call.1} parent=65 // loop_footer
                  %s1094 = sadd.s32 %s1092, 1
                $region79: #{tpu_custom_call.1} parent=65 // loop_footer_branch
                  %1091 = sbr.rel target = $region75
                $region80: #{tpu_custom_call.1} parent=65 // loop_exit
                  _
              $region66: #{tpu_custom_call.1} parent=43 // pred_fallthru
                _
              // Predicated region
              $region81: #{tpu_custom_call.1} parent=43 // pred_check
                _
              $region82: #{tpu_custom_call.1} parent=43 // pred_check_branch
                %1110 = sbr.rel target = $region84
              $region83: #{tpu_custom_call.1} parent=43 // pred_region
                _
              $region84: #{tpu_custom_call.1} parent=43 // pred_fallthru
                _
            $region44: #{tpu_custom_call.1} parent=39 // pred_fallthru
              _
            // Predicated region
            $region45: #{tpu_custom_call.1} parent=39 // pred_check
              _
            $region46: #{tpu_custom_call.1} parent=39 // pred_check_branch
              %956 = sbr.rel target = $region48
            $region47: #{tpu_custom_call.1} parent=39 // pred_region
              %s958 = ssub.s32 256, 1
              %s959 = sshrl.u32 %s945, 4
              // While loop
              $region49: #{tpu_custom_call.1} parent=47 // loop_pre_header
                _
              $region50: #{tpu_custom_call.1} parent=47 // loop_header
                %s961 = sphi 0, %s963
                %p962 = scmp.ge.s32.totalorder %s961, %s959
                %s966 = sphi 0, %s1003
                %s967 = sphi %s938, %s1006
                %s968 = sphi %s949, %s1007
              $region51: #{tpu_custom_call.1} parent=47 // loop_header_branch
                %965 = sbr.rel (%p962) target = $region55
              $region52: #{tpu_custom_call.1} parent=47 // loop_body
                %v969 = vld [vmem:[%s967] sm:%s958]
                %970 = vst [vmem:[%s968] sm:%s958] %v969
                %v971 = vld [vmem:[%s967 + $0x8] sm:%s958]
                %972 = vst [vmem:[%s968 + $0x8] sm:%s958] %v971
                %v973 = vld [vmem:[%s967 + $0x10] sm:%s958]
                %974 = vst [vmem:[%s968 + $0x10] sm:%s958] %v973
                %v975 = vld [vmem:[%s967 + $0x18] sm:%s958]
                %976 = vst [vmem:[%s968 + $0x18] sm:%s958] %v975
                %v977 = vld [vmem:[%s967 + $0x20] sm:%s958]
                %978 = vst [vmem:[%s968 + $0x20] sm:%s958] %v977
                %v979 = vld [vmem:[%s967 + $0x28] sm:%s958]
                %980 = vst [vmem:[%s968 + $0x28] sm:%s958] %v979
                %v981 = vld [vmem:[%s967 + $0x30] sm:%s958]
                %982 = vst [vmem:[%s968 + $0x30] sm:%s958] %v981
                %v983 = vld [vmem:[%s967 + $0x38] sm:%s958]
                %984 = vst [vmem:[%s968 + $0x38] sm:%s958] %v983
                %v985 = vld [vmem:[%s967 + $0x40] sm:%s958]
                %986 = vst [vmem:[%s968 + $0x40] sm:%s958] %v985
                %v987 = vld [vmem:[%s967 + $0x48] sm:%s958]
                %988 = vst [vmem:[%s968 + $0x48] sm:%s958] %v987
                %v989 = vld [vmem:[%s967 + $0x50] sm:%s958]
                %990 = vst [vmem:[%s968 + $0x50] sm:%s958] %v989
                %v991 = vld [vmem:[%s967 + $0x58] sm:%s958]
                %992 = vst [vmem:[%s968 + $0x58] sm:%s958] %v991
                %v993 = vld [vmem:[%s967 + $0x60] sm:%s958]
                %994 = vst [vmem:[%s968 + $0x60] sm:%s958] %v993
                %v995 = vld [vmem:[%s967 + $0x68] sm:%s958]
                %996 = vst [vmem:[%s968 + $0x68] sm:%s958] %v995
                %v997 = vld [vmem:[%s967 + $0x70] sm:%s958]
                %998 = vst [vmem:[%s968 + $0x70] sm:%s958] %v997
                %v999 = vld [vmem:[%s967 + $0x78] sm:%s958]
                %1000 = vst [vmem:[%s968 + $0x78] sm:%s958] %v999
                %s1001 = sadd.s32 1, %s966
                %p1002 = scmp.ge.s32.totalorder %s1001, %s959
                %s1003 = scalar_select %p1002, 0, %s1001
                %s1004 = smul.u32 %s1003, 128
                %s1005 = smul.u32 %s1003, 128
                %s1006 = scalar_lea.vmem %s938, %s1004 [#allocation2]
                %s1007 = scalar_lea.vmem %s949, %s1005
              $region53: #{tpu_custom_call.1} parent=47 // loop_footer
                %s963 = sadd.s32 %s961, 1
              $region54: #{tpu_custom_call.1} parent=47 // loop_footer_branch
                %960 = sbr.rel target = $region50
              $region55: #{tpu_custom_call.1} parent=47 // loop_exit
                _
              %s1008 = sshrl.u32 %s945, 4
              %s1009 = sand.u32 %s945, 15
              %s1010 = smul.u32 %s1008, 16
              %s1011 = smul.u32 8, %s1010
              %s1012 = scalar_lea.vmem %s938, %s1011 [#allocation2]
              %s1013 = smul.u32 8, %s1010
              %s1014 = scalar_lea.vmem %s949, %s1013
              // While loop
              $region56: #{tpu_custom_call.1} parent=47 // loop_pre_header
                _
              $region57: #{tpu_custom_call.1} parent=47 // loop_header
                %s1016 = sphi 0, %s1018
                %p1017 = scmp.ge.s32.totalorder %s1016, %s1009
                %s1021 = sphi 0, %s1028
                %s1022 = sphi %s1012, %s1031
                %s1023 = sphi %s1014, %s1032
              $region58: #{tpu_custom_call.1} parent=47 // loop_header_branch
                %1020 = sbr.rel (%p1017) target = $region62
              $region59: #{tpu_custom_call.1} parent=47 // loop_body
                %v1024 = vld [vmem:[%s1022] sm:%s958]
                %1025 = vst [vmem:[%s1023] sm:%s958] %v1024
                %s1026 = sadd.s32 1, %s1021
                %p1027 = scmp.ge.s32.totalorder %s1026, %s1009
                %s1028 = scalar_select %p1027, 0, %s1026
                %s1029 = smul.u32 %s1028, 8
                %s1030 = smul.u32 %s1028, 8
                %s1031 = scalar_lea.vmem %s1012, %s1029 [#allocation2]
                %s1032 = scalar_lea.vmem %s1014, %s1030
              $region60: #{tpu_custom_call.1} parent=47 // loop_footer
                %s1018 = sadd.s32 %s1016, 1
              $region61: #{tpu_custom_call.1} parent=47 // loop_footer_branch
                %1015 = sbr.rel target = $region57
              $region62: #{tpu_custom_call.1} parent=47 // loop_exit
                _
            $region48: #{tpu_custom_call.1} parent=39 // pred_fallthru
              _
          $region40: #{tpu_custom_call.1} parent=35 // pred_fallthru
            _
          %1111 = vnop
        $region36: #{tpu_custom_call.1} parent=31 // pred_fallthru
          _
      $region32: #{tpu_custom_call.1} parent=5 // pred_fallthru
        _
      %p1112 = scmp.le.s32.totalorder 2, %s9
      // Predicated region
      $region85: #{tpu_custom_call.1} parent=5 // pred_check
        %p1113 = pneg %p1112
      $region86: #{tpu_custom_call.1} parent=5 // pred_check_branch
        %1115 = sbr.rel (%p1113) target = $region88
      $region87: #{tpu_custom_call.1} parent=5 // pred_region
        %s1116 = ssub.s32 %s9, 2
        // Predicated region
        $region89: #{tpu_custom_call.1} parent=87 // pred_check
          %p1117 = pneg %p111
        $region90: #{tpu_custom_call.1} parent=87 // pred_check_branch
          %1119 = sbr.rel (%p1117) target = $region92
        $region91: #{tpu_custom_call.1} parent=87 // pred_region
          %s1120 = sand.u32 %s96, 1
          %s1121 = sand.u32 %s96, 1
          %s1122 = smul.addr %s1121, 128
          %s1123 = scalar_lea.vmem [#allocation2], %s1122
        $region92: #{tpu_custom_call.1} parent=87 // pred_fallthru
          _
      $region88: #{tpu_custom_call.1} parent=5 // pred_fallthru
        _
    $region6: #{tpu_custom_call.1} parent=1 // loop_footer
      %s13 = sadd.s32 1, %s9
    $region7: #{tpu_custom_call.1} parent=1 // loop_footer_branch
      %8 = sbr.rel target = $region3
    $region8: #{tpu_custom_call.1} parent=1 // loop_exit
      _

</llo_original>
